<compile_context>
chip_gen: v5e
topology: v5e:2x2
jax: 0.10.0
libtpu: 0.0.40
codegen_flags: <defaults>
</compile_context>

<pallas_src>
import functools
import math

import jax
import jax.numpy as jnp
from jax import lax
from jax.experimental import pallas as pl
from jax.experimental.pallas import tpu as pltpu

_LANE = 128                # lane width: last dim of every VMEM block
_SUBLANE = 8               # sublane granule: second-to-last dim of VMEM blocks
_N_INFLIGHT = 8            # outstanding row DMAs in the gather path
_GATHER_MIN_VOCAB = 1024   # above this (4-byte tables) prefer the DMA row gather


def _round_up(x: int, m: int) -> int:
    return (x + m - 1) // m * m


def _vmem_limit_bytes(*buffers: int) -> int:
    """Explicit scoped-VMEM budget: actual buffers + headroom, capped for v7x."""
    need = sum(int(b) for b in buffers) + (4 << 20)
    return int(min(48 << 20, max(16 << 20, need)))


# ---------------------------------------------------------------------------
# Path 1: vocab-tiled one-hot gather on the MXU.
# ---------------------------------------------------------------------------
def _emb_onehot_kernel(ids_ref, table_ref, out_ref, acc_ref, *, scale, vocab):
    # ids_ref:   VMEM (tok_block, 1) int32 token ids for this block
    # table_ref: VMEM (vk, dmp) vocab chunk (resident when there is one chunk)
    # out_ref:   VMEM (tok_block, dmp) output block (resident across the k axis)
    # acc_ref:   VMEM (tok_block, dmp) f32 accumulator scratch
    k = pl.program_id(1)
    vk = table_ref.shape[0]

    @pl.when(k == 0)
    def _init():
        acc_ref[...] = jnp.zeros_like(acc_ref)

    # Clamp (matches jnp.take; torch.nn.Embedding would raise instead).
    ids = jnp.clip(ids_ref[...], 0, vocab - 1)                      # (TB, 1)
    cols = k * vk + lax.broadcasted_iota(jnp.int32, (ids.shape[0], vk), 1)
    onehot = (ids == cols).astype(table_ref.dtype)                  # (TB, VK)
    # Exact 0/1 gather on the MXU, accumulated in f32 across vocab chunks.
    acc_ref[...] += jnp.dot(onehot, table_ref[...],
                            preferred_element_type=jnp.float32)

    @pl.when(k == pl.num_programs(1) - 1)
    def _finalize():
        out_ref[...] = (acc_ref[...] * scale).astype(out_ref.dtype)


# ---------------------------------------------------------------------------
# Path 2: HBM row gather with a small ring of outstanding DMAs.
# ---------------------------------------------------------------------------
def _emb_gather_kernel(ids_ref, table_ref, out_ref, stage_ref, sem_ref, *,
                       scale, vocab):
    # ids_ref:   SMEM (n_pad,) int32 token ids (scalar-prefetch operand)
    # table_ref: HBM  (vocab, dmp) table (memory_space=pl.ANY)
    # out_ref:   VMEM (tok_block, dmp) output block
    # stage_ref: VMEM (tok_block, dmp) staging buffer for gathered rows
    # sem_ref:   (n_inflight,) DMA semaphores (copy ring)
    tok_block = out_ref.shape[0]
    n_inflight = min(_N_INFLIGHT, tok_block)
    base = pl.program_id(0) * tok_block

    def row_copy(t, slot):
        row = jnp.clip(ids_ref[base + t], 0, vocab - 1)
        return pltpu.make_async_copy(table_ref.at[pl.ds(row, 1)],
                                     stage_ref.at[pl.ds(t, 1)],
                                     sem_ref.at[slot])

    # Prime the ring: n_inflight row copies outstanding.
    for t in range(n_inflight):
        row_copy(t, t).start()

    @pl.loop(0, tok_block)
    def _gather(t):
        slot = t % n_inflight
        # Wait for row t (every row copy has the same transfer size, so the
        # shared-slot byte count matches), then reuse its slot for t+n_inflight.
        pltpu.make_async_copy(table_ref.at[pl.ds(0, 1)],
                              stage_ref.at[pl.ds(t, 1)],
                              sem_ref.at[slot]).wait()

        @pl.when(t + n_inflight < tok_block)
        def _prefetch_next():
            row_copy(t + n_inflight, slot).start()

    out_ref[...] = (stage_ref[...] * scale).astype(out_ref.dtype)


# ---------------------------------------------------------------------------
# Wrapper.
# ---------------------------------------------------------------------------
def embeddings_forward(x_ids, table, *, tok_block=256, vocab_block=512,
                       path=None):
    """Pallas equivalent of Embeddings.forward: emb(x) * sqrt(d_model).

    x_ids: (B, S) integer ids.  table: (vocab, d_model) weights.
    Returns (B, S, d_model) in the table dtype.
    """
    if x_ids.ndim != 2:
        raise ValueError(f"x_ids must be (batch, seq), got {x_ids.shape}")
    B, S = x_ids.shape
    vocab, d_model = table.shape
    N = B * S
    scale = float(math.sqrt(d_model))
    itemsize = table.dtype.itemsize

    if path is None:
        # One-hot MXU gather goes compute-bound beyond ~1K vocab rows.
        path = "gather" if (vocab > _GATHER_MIN_VOCAB and itemsize == 4) else "onehot"
    if path not in ("onehot", "gather"):
        raise ValueError(f"unknown path {path!r}")
    if path == "gather" and itemsize != 4:
        raise ValueError("gather path requires a 4-byte table dtype")

    # Lane-dense output blocks: pad d_model to a multiple of 128 (pad columns
    # are zero and get sliced off below).
    dmp = _round_up(d_model, _LANE)
    if dmp != d_model:
        table = jnp.pad(table, ((0, 0), (0, dmp - d_model)))

    # Token blocking.  Shrink tok_block for tiny inputs so there are >= 2 blocks
    # to split across v7x's two TensorCores ("parallel" token-block axis).
    tok_block = int(min(tok_block,
                        max(_SUBLANE, _round_up(max(N // 2, 1), _SUBLANE))))
    n_pad = _round_up(N, tok_block)
    num_blocks = n_pad // tok_block

    ids_flat = x_ids.reshape(N).astype(jnp.int32)
    if n_pad != N:
        ids_flat = jnp.pad(ids_flat, (0, n_pad - N))   # pad id 0: a valid row

    if path == "onehot":
        vk = min(_round_up(vocab_block, _SUBLANE), _round_up(vocab, _SUBLANE))
        vocab_pad = _round_up(vocab, vk)
        num_vblocks = vocab_pad // vk
        table_p = (jnp.pad(table, ((0, vocab_pad - vocab), (0, 0)))
                   if vocab_pad != vocab else table)

        if num_vblocks == 1:
            # Whole (padded) vocab in one chunk: constant block index => the
            # table is DMA'd into VMEM exactly once; single-buffer it so it does
            # not pay 2x VMEM for a buffer that is never re-fetched.
            table_spec = pl.BlockSpec((vk, dmp), lambda i, k: (0, 0),
                                      pipeline_mode=pl.Buffered(1))
        else:
            table_spec = pl.BlockSpec((vk, dmp), lambda i, k: (k, 0))

        vmem_bytes = _vmem_limit_bytes(
            (1 if num_vblocks == 1 else 2) * vk * dmp * itemsize,  # table chunk(s)
            2 * tok_block * dmp * itemsize,   # double-buffered output blocks
            2 * tok_block * _LANE * 4,        # ids blocks (lane-padded int32)
            tok_block * dmp * 4,              # f32 accumulator scratch
            tok_block * vk * itemsize,        # one-hot transient
            tok_block * dmp * 4)              # f32 matmul-result transient

        kernel = functools.partial(_emb_onehot_kernel, scale=scale, vocab=vocab)
        out_flat = pl.pallas_call(
            kernel,
            out_shape=jax.ShapeDtypeStruct((n_pad, dmp), table.dtype),
            grid=(num_blocks, num_vblocks),        # reduction (vocab) axis last
            in_specs=[
                pl.BlockSpec((tok_block, 1), lambda i, k: (i, 0)),
                table_spec,
            ],
            out_specs=pl.BlockSpec((tok_block, dmp), lambda i, k: (i, 0)),
            scratch_shapes=[pltpu.VMEM((tok_block, dmp), jnp.float32)],
            compiler_params=pltpu.CompilerParams(
                dimension_semantics=("parallel", "arbitrary"),
                vmem_limit_bytes=vmem_bytes),
        )(ids_flat.reshape(n_pad, 1), table_p)

    else:  # path == "gather"
        n_inflight = min(_N_INFLIGHT, tok_block)
        vmem_bytes = _vmem_limit_bytes(
            tok_block * dmp * itemsize,        # staging buffer
            2 * tok_block * dmp * itemsize)    # double-buffered output blocks

        kernel = functools.partial(_emb_gather_kernel, scale=scale, vocab=vocab)
        grid_spec = pltpu.PrefetchScalarGridSpec(
            num_scalar_prefetch=1,             # ids -> SMEM (DMA addressing)
            grid=(num_blocks,),
            in_specs=[pl.BlockSpec(memory_space=pl.ANY)],   # table stays in HBM
            out_specs=pl.BlockSpec((tok_block, dmp), lambda i, ids: (i, 0)),
            scratch_shapes=[
                pltpu.VMEM((tok_block, dmp), table.dtype),
                pltpu.SemaphoreType.DMA((n_inflight,)),
            ])
        out_flat = pl.pallas_call(
            kernel,
            out_shape=jax.ShapeDtypeStruct((n_pad, dmp), table.dtype),
            grid_spec=grid_spec,
            compiler_params=pltpu.CompilerParams(
                dimension_semantics=("parallel",),
                vmem_limit_bytes=vmem_bytes),
        )(ids_flat, table)

    return out_flat[:N, :d_model].reshape(B, S, d_model)


if __name__ == "__main__":
    root = jax.random.PRNGKey(0)

    cases = [
        # Module-consistent tiny shapes: resident table, Buffered(1), one chunk.
        dict(name="onehot-resident-f32", vocab=64, d_model=32, B=2, S=8,
             dtype=jnp.float32, path=None, tol=1e-6),
        # Vocab-tiled one-hot with a bf16 table (4 vocab chunks, f32 accumulate).
        dict(name="onehot-vocab-tiled-bf16", vocab=2048, d_model=128, B=2, S=8,
             dtype=jnp.bfloat16, path="onehot", tol=2e-2),
        # HBM row-gather path (scalar-prefetch ids + ring of async row copies).
        dict(name="dma-row-gather-f32", vocab=4096, d_model=96, B=2, S=32,
             dtype=jnp.float32, path="gather", tol=1e-6),
    ]

    for idx, case in enumerate(cases):
        kt, ki = jax.random.split(jax.random.fold_in(root, idx))
        vocab, d_model = case["vocab"], case["d_model"]
        B, S = case["B"], case["S"]

        # nn.Embedding default init: N(0, 1) weights.
        table = jax.random.normal(kt, (vocab, d_model),
                                  dtype=jnp.float32).astype(case["dtype"])
        x_ids = jax.random.randint(ki, (B, S), minval=0, maxval=vocab,
                                   dtype=jnp.int32)

        out = embeddings_forward(x_ids, table, path=case["path"])
        out = jax.block_until_ready(out)

        # Pure-JAX reference (same op order: gather, scale in f32, cast).
        ref = jnp.take(table.astype(jnp.float32), x_ids.reshape(-1), axis=0)
        ref = (ref * jnp.float32(math.sqrt(d_model))).astype(table.dtype)
        ref = ref.reshape(B, S, d_model)

        assert out.shape == (B, S, d_model), (case["name"], out.shape)
        assert out.dtype == table.dtype, (case["name"], out.dtype)
        assert jnp.allclose(out.astype(jnp.float32), ref.astype(jnp.float32),
                            atol=case["tol"], rtol=case["tol"]), case["name"]

    print("KERNEL_OK")
</pallas_src>

<mosaic_0001>
module attributes {stable_mosaic.version = 11 : i64} {
  func.func @_emb_onehot_kernel(%arg0: i32, %arg1: i32, %arg2: memref<8x1xi32, #tpu.memory_space<vmem>>, %arg3: memref<64x128xf32, #tpu.memory_space<vmem>>, %arg4: memref<8x128xf32, #tpu.memory_space<vmem>>, %arg5: memref<8x128xf32, #tpu.memory_space<vmem>>) attributes {dimension_semantics = [#tpu.dimension_semantics<parallel>, #tpu.dimension_semantics<arbitrary>], iteration_bounds = array<i64: 2, 1>, scalar_prefetch = 0 : i64, scratch_operands = 1 : i64, tpu.core_type = #tpu.core_type<tc>, window_params = [{transform_indices = @transform_0, window_bounds = array<i64: 8, 1>}, {pipeline_mode = #tpu.pipeline_mode<synchronous>, transform_indices = @transform_1, window_bounds = array<i64: 64, 128>}, {transform_indices = @transform_2, window_bounds = array<i64: 8, 128>}]} {
    %c0_i32 = arith.constant 0 : i32
    %0 = arith.cmpi eq, %arg1, %c0_i32 : i32
    %1 = arith.extui %0 : i1 to i32
    %c0_i32_0 = arith.constant 0 : i32
    %2 = arith.cmpi ne, %1, %c0_i32_0 : i32
    scf.if %2 {
      %cst_11 = arith.constant 0.000000e+00 : f32
      %24 = vector.broadcast %cst_11 : f32 to vector<8x128xf32>
      %c0_12 = arith.constant 0 : index
      %c0_13 = arith.constant 0 : index
      %25 = vector.load %arg5[%c0_12, %c0_13] : memref<8x128xf32, #tpu.memory_space<vmem>>, vector<8x128xf32>
      tpu.vector_store %arg5[%c0_12, %c0_13], %24 {strides = array<i32>} : memref<8x128xf32, #tpu.memory_space<vmem>>, vector<8x128xf32>,
    } else {
    }
    %c0 = arith.constant 0 : index
    %c0_1 = arith.constant 0 : index
    %3 = vector.load %arg2[%c0, %c0_1] : memref<8x1xi32, #tpu.memory_space<vmem>>, vector<8x1xi32>
    %c0_i32_2 = arith.constant 0 : i32
    %c63_i32 = arith.constant 63 : i32
    %4 = vector.broadcast %c0_i32_2 : i32 to vector<8x1xi32>
    %5 = arith.maxsi %4, %3 : vector<8x1xi32>
    %6 = vector.broadcast %c63_i32 : i32 to vector<8x1xi32>
    %7 = arith.minsi %6, %5 : vector<8x1xi32>
    %c64_i32 = arith.constant 64 : i32
    %8 = arith.muli %arg1, %c64_i32 : i32
    %9 = tpu.iota {dimensions = array<i32: 1>} : vector<8x64xi32>
    %10 = vector.broadcast %8 : i32 to vector<8x64xi32>
    %11 = arith.addi %10, %9 : vector<8x64xi32>
    %12 = vector.broadcast %7 : vector<8x1xi32> to vector<8x64xi32>
    %13 = arith.cmpi eq, %12, %11 : vector<8x64xi32>
    %14 = arith.extui %13 : vector<8x64xi1> to vector<8x64xi32>
    %15 = arith.sitofp %14 : vector<8x64xi32> to vector<8x64xf32>
    %c0_3 = arith.constant 0 : index
    %c0_4 = arith.constant 0 : index
    %16 = vector.load %arg5[%c0_3, %c0_4] : memref<8x128xf32, #tpu.memory_space<vmem>>, vector<8x128xf32>
    %c0_5 = arith.constant 0 : index
    %c0_6 = arith.constant 0 : index
    %17 = vector.load %arg3[%c0_5, %c0_6] : memref<64x128xf32, #tpu.memory_space<vmem>>, vector<64x128xf32>
    %cst = arith.constant dense<0.000000e+00> : vector<8x128xf32>
    %18 = tpu.matmul %15, %17, %cst {dimension_numbers = #tpu.dot_dimension_numbers<[1], [0], [0], [1], [0, 0, 1, 1], [], []>} : vector<8x64xf32>, vector<64x128xf32>, vector<8x128xf32> -> vector<8x128xf32>
    %19 = arith.addf %16, %18 : vector<8x128xf32>
    %c0_7 = arith.constant 0 : index
    %c0_8 = arith.constant 0 : index
    %20 = vector.load %arg5[%c0_7, %c0_8] : memref<8x128xf32, #tpu.memory_space<vmem>>, vector<8x128xf32>
    tpu.vector_store %arg5[%c0_7, %c0_8], %19 {strides = array<i32>} : memref<8x128xf32, #tpu.memory_space<vmem>>, vector<8x128xf32>,
    %c0_i32_9 = arith.constant 0 : i32
    %21 = arith.cmpi eq, %arg1, %c0_i32_9 : i32
    %22 = arith.extui %21 : i1 to i32
    %c0_i32_10 = arith.constant 0 : i32
    %23 = arith.cmpi ne, %22, %c0_i32_10 : i32
    scf.if %23 {
      %c0_11 = arith.constant 0 : index
      %c0_12 = arith.constant 0 : index
      %24 = vector.load %arg5[%c0_11, %c0_12] : memref<8x128xf32, #tpu.memory_space<vmem>>, vector<8x128xf32>
      %cst_13 = arith.constant 5.65685415 : f32
      %25 = vector.broadcast %cst_13 : f32 to vector<8x128xf32>
      %26 = arith.mulf %24, %25 : vector<8x128xf32>
      %c0_14 = arith.constant 0 : index
      %c0_15 = arith.constant 0 : index
      %27 = vector.load %arg4[%c0_14, %c0_15] : memref<8x128xf32, #tpu.memory_space<vmem>>, vector<8x128xf32>
      tpu.vector_store %arg4[%c0_14, %c0_15], %26 {strides = array<i32>} : memref<8x128xf32, #tpu.memory_space<vmem>>, vector<8x128xf32>,
    } else {
    }
    return
  }
  func.func @transform_0(%arg0: i32, %arg1: i32) -> (i32, i32) {
    %c0_i32 = arith.constant 0 : i32
    %c0_i32_0 = arith.constant 0 : i32
    return %arg0, %c0_i32 : i32, i32
  }
  func.func @transform_1(%arg0: i32, %arg1: i32) -> (i32, i32) {
    %c0_i32 = arith.constant 0 : i32
    %c0_i32_0 = arith.constant 0 : i32
    %c0_i32_1 = arith.constant 0 : i32
    return %c0_i32, %c0_i32_0 : i32, i32
  }
  func.func @transform_2(%arg0: i32, %arg1: i32) -> (i32, i32) {
    %c0_i32 = arith.constant 0 : i32
    %c0_i32_0 = arith.constant 0 : i32
    return %arg0, %c0_i32 : i32, i32
  }
}

</mosaic_0001>

<llo_original>
// kernel: tpu_custom_call.1
$region0: #{tpu_custom_call.1}
  #allocation0 [shape = 'u32[]', space=smem, size = 0x4, offset = 0x4, fixed_abs, tag = 'smem constant byte address 0x4 - core index']
  #allocation1 [shape = 'u32[72,128]{1,0:T(1,128)}', space=vmem, size = 0x9000, scoped, tag = 'internal scratch']
  #allocation2 [shape = 'f32[8,128]{1,0:T(8,128)}', space=vmem, size = 0x1000, scoped, tag = 'scratch operand']
  %s0 = inlined_call_operand.vmem [shape: s32[16,1], index: 0, kind: input, shape index: {}]
  %s1 = inlined_call_operand.hbm [shape: f32[64,128], index: 1, kind: input, shape index: {}]
  %s2 = inlined_call_operand.hbm [shape: f32[16,128], index: 2, kind: output, shape index: {}]
  %s3 = sld [smem:[#allocation0]]
  $region53: #{tpu_custom_call.1} parent=0
    _
  %s5 = ssub.s32 1, %s3
  %s6 = scalar_select 0, %s5, %s3
  $region1: #{tpu_custom_call.1} parent=0
    #allocation3 [shape = 'u8[32768]{0}', space=vmem, size = 0x8000, scoped, tag = 'input window, operand 1, single buffered']
    #allocation4 [shape = 's32[2]{0}', space=sflag, size = 0x8, scoped, tag = 'scoped memory for tpu_custom_call.1']
    #allocation5 [shape = 's32[2]{0}', space=sflag, size = 0x8, scoped, tag = 'scoped memory for tpu_custom_call.1']
    #allocation6 [shape = 'u8[8192]{0}', space=vmem, size = 0x2000, scoped, tag = 'output window, operand 0']
    %7 = vsyncpa [#allocation4], 0
    %8 = vsyncpa [#allocation5], 0
    %s9 = scalar_lea.sflag [#allocation5], 1
    %10 = vsyncpa %s9, 0
    loop: start=0, step=1, limit=4
    $region2: #{tpu_custom_call.1} parent=1 // loop_pre_header
      _
    $region3: #{tpu_custom_call.1} parent=1 // loop_header
      %s12 = sphi 0, %s16
      %p13 = scmp.ge.s32.totalorder %s12, 4
      %s19 = sphi 0, %s31
      %s20 = sphi 0, %s27
      %s21 = sphi 0, %s19
      %s22 = sphi 0, %s20
      %s23 = sphi 0, %s21
      %s24 = sphi 0, %s22
      %s34 = sphi 0, %s36
      %s37 = sphi 0, %s34
      %s38 = sphi 0, %s37
      %s54 = sphi 0, %s38
      %s58 = sphi 0, %s58
      %s60 = sphi 0, %s58
      %s61 = sphi 0, %s60
      %s75 = sphi 0, %s61
      %s81 = sphi 0, %s83
      %s84 = sphi 0, %s81
      %s85 = sphi 0, %s84
      %s101 = sphi 0, %s85
    $region4: #{tpu_custom_call.1} parent=1 // loop_header_branch
      %15 = sbr.rel (%p13) target = $region8
    $region5: #{tpu_custom_call.1} parent=1 // loop_body
      %s17 = ssub.s32 %s12, 1
      %s18 = ssub.s32 %s12, 2
      %s25 = sadd.s32 1, %s20
      %p26 = scmp.ge.s32.totalorder %s25, 1
      %s27 = scalar_select %p26, 0, %s25
      %s28 = sadd.s32 1, %s19
      %s29 = scalar_select %p26, %s28, %s19
      %p30 = scmp.ge.s32.totalorder %s29, 2
      %s31 = scalar_select %p30, 0, %s29
      %s32 = ssub.s32 %s19, %s31
      %p33 = scmp.eq.s32.totalorder %s32, 0
      %s35 = sadd.s32 %s34, 1
      %s36 = scalar_select %p33, %s34, %s35
      %p39 = pneg %p33
      %p40 = scmp.eq.s32.totalorder %s12, 1
      %p41 = por %p39, %p40
      %p42 = scmp.ne.s32.totalorder %s34, %s37
      %p43 = scmp.eq.s32.totalorder %s12, 0
      %p44 = por %p42, %p43
      %p45 = scmp.ne.s32.totalorder %s34, %s37
      %p46 = scmp.eq.s32.totalorder %s17, 1
      %p47 = por %p45, %p46
      %p48 = scmp.ne.s32.totalorder %s37, %s38
      %p49 = scmp.eq.s32.totalorder %s17, 0
      %p50 = por %p48, %p49
      %p51 = scmp.ne.s32.totalorder %s37, %s38
      %p52 = scmp.eq.s32.totalorder %s18, 1
      %p53 = por %p51, %p52
      %p55 = scmp.ne.s32.totalorder %s38, %s54
      %p56 = scmp.eq.s32.totalorder %s18, 0
      %p57 = por %p55, %p56
      %s59 = sadd.s32 %s58, 1
      %p62 = scmp.eq.s32.totalorder %s12, 1
      %p63 = scmp.ne.s32.totalorder %s58, %s60
      %p64 = scmp.eq.s32.totalorder %s12, 0
      %p65 = por %p63, %p64
      %p66 = scmp.ne.s32.totalorder %s58, %s60
      %p67 = scmp.eq.s32.totalorder %s17, 1
      %p68 = por %p66, %p67
      %p69 = scmp.ne.s32.totalorder %s60, %s61
      %p70 = scmp.eq.s32.totalorder %s17, 0
      %p71 = por %p69, %p70
      %p72 = scmp.ne.s32.totalorder %s60, %s61
      %p73 = scmp.eq.s32.totalorder %s18, 1
      %p74 = por %p72, %p73
      %p76 = scmp.ne.s32.totalorder %s61, %s75
      %p77 = scmp.eq.s32.totalorder %s18, 0
      %p78 = por %p76, %p77
      %s79 = ssub.s32 %s19, %s31
      %p80 = scmp.eq.s32.totalorder %s79, 0
      %s82 = sadd.s32 %s81, 1
      %s83 = scalar_select %p80, %s81, %s82
      %p86 = pneg %p80
      %p87 = scmp.eq.s32.totalorder %s12, 1
      %p88 = por %p86, %p87
      %p89 = scmp.ne.s32.totalorder %s81, %s84
      %p90 = scmp.eq.s32.totalorder %s12, 0
      %p91 = por %p89, %p90
      %p92 = scmp.ne.s32.totalorder %s81, %s84
      %p93 = scmp.eq.s32.totalorder %s17, 1
      %p94 = por %p92, %p93
      %p95 = scmp.ne.s32.totalorder %s84, %s85
      %p96 = scmp.eq.s32.totalorder %s17, 0
      %p97 = por %p95, %p96
      %p98 = scmp.ne.s32.totalorder %s84, %s85
      %p99 = scmp.eq.s32.totalorder %s18, 1
      %p100 = por %p98, %p99
      %p102 = scmp.ne.s32.totalorder %s85, %s101
      %p103 = scmp.eq.s32.totalorder %s18, 0
      %p104 = por %p102, %p103
      %p105 = scmp.le.s32.totalorder 1, %s12
      %p106 = scmp.lt.s32.totalorder %s12, 3
      %p107 = pnand %p105, %p106
      %p108 = pneg %p107
      // Predicated region
      $region9: #{tpu_custom_call.1} parent=5 // pred_check
        _
      $region10: #{tpu_custom_call.1} parent=5 // pred_check_branch
        %110 = sbr.rel (%p107) target = $region12
      $region11: #{tpu_custom_call.1} parent=5 // pred_region
        %s111 = ssub.s32 %s12, 1
        // Predicated region
        $region13: #{tpu_custom_call.1} parent=11 // pred_check
          %p112 = pneg %p71
        $region14: #{tpu_custom_call.1} parent=11 // pred_check_branch
          %114 = sbr.rel (%p112) target = $region16
        $region15: #{tpu_custom_call.1} parent=11 // pred_region
          %116 = vsyncadd [#allocation4], 0
          %s117 = sshll.u32 %s1, 4
          %s118 = int_to_ptr.hbm [resolvable:$true] %s117
          %s119 = sshll.u32 [#allocation3], 4
          %s120 = int_to_ptr.vmem [resolvable:$true] %s119
          %125 = dma.hbm_to_vmem [thread:$0]  %s118, 1024, %s120, [#allocation4], 128, 128, 8
        $region16: #{tpu_custom_call.1} parent=11 // pred_fallthru
          _
      $region12: #{tpu_custom_call.1} parent=5 // pred_fallthru
        _
      %p126 = scmp.lt.s32.totalorder %s12, 2
      // Predicated region
      $region17: #{tpu_custom_call.1} parent=5 // pred_check
        %p127 = pneg %p126
      $region18: #{tpu_custom_call.1} parent=5 // pred_check_branch
        %129 = sbr.rel (%p127) target = $region20
      $region19: #{tpu_custom_call.1} parent=5 // pred_region
        // Predicated region
        $region21: #{tpu_custom_call.1} parent=19 // pred_check
          %p130 = pneg %p44
        $region22: #{tpu_custom_call.1} parent=19 // pred_check_branch
          %132 = sbr.rel (%p130) target = $region24
        $region23: #{tpu_custom_call.1} parent=19 // pred_region
          %p133 = scmp.lt.s32.totalorder %s19, 1
          %s134 = scalar_select %p133, %s19, 1
          %s135 = smul.addr %s134, 8
          %s136 = scalar_lea.vmem %s0, %s135
        $region24: #{tpu_custom_call.1} parent=19 // pred_fallthru
          _
      $region20: #{tpu_custom_call.1} parent=5 // pred_fallthru
        _
      %p137 = scmp.le.s32.totalorder 1, %s12
      %p138 = scmp.lt.s32.totalorder %s12, 3
      %p139 = pnand %p137, %p138
      %p140 = pneg %p139
      // Predicated region
      $region25: #{tpu_custom_call.1} parent=5 // pred_check
        _
      $region26: #{tpu_custom_call.1} parent=5 // pred_check_branch
        %142 = sbr.rel (%p139) target = $region28
      $region27: #{tpu_custom_call.1} parent=5 // pred_region
        %s143 = ssub.s32 %s12, 1
        // Predicated region
        $region29: #{tpu_custom_call.1} parent=27 // pred_check
          %p144 = pneg %p71
        $region30: #{tpu_custom_call.1} parent=27 // pred_check_branch
          %146 = sbr.rel (%p144) target = $region32
        $region31: #{tpu_custom_call.1} parent=27 // pred_region
          %148 = dma.done [#allocation4], 1024
        $region32: #{tpu_custom_call.1} parent=27 // pred_fallthru
          _
        %p149 = scmp.lt.s32.totalorder %s21, 1
        %s150 = scalar_select %p149, %s21, 1
        %s151 = smul.addr %s150, 8
        %s152 = scalar_lea.vmem %s0, %s151
        %p153 = pneg %p50
        %p154 = pneg %p47
        %p155 = pneg %p71
        %p156 = pneg %p68
        %p157 = pneg %p97
        %p158 = pneg %p94
        %s159 = sand.u32 %s84, 1
        %s160 = scalar_lea.sflag [#allocation5], %s159
        %s161 = sand.u32 %s84, 1
        %s162 = smul.addr %s161, 8
        %s163 = scalar_lea.vmem [#allocation6], %s162
        %p164 = scmp.lt.s32.totalorder %s21, 1
        %s165 = scalar_select %p164, %s21, 1
        %s166 = smul.addr %s165, 8
        %s167 = scalar_lea.vmem %s0, %s166
        %p168 = scmp.eq.s32.totalorder %s22, 0
        // Predicated region
        $region33: #{tpu_custom_call.1} parent=27 // pred_check
          %p169 = pneg %p168
        $region34: #{tpu_custom_call.1} parent=27 // pred_check_branch
          %171 = sbr.rel (%p169) target = $region36
        $region35: #{tpu_custom_call.1} parent=27 // pred_region
          %172 = vst [vmem:[#allocation2] sm:$0xff] 0.0
        $region36: #{tpu_custom_call.1} parent=27 // pred_fallthru
          _
        %v173 = vld [vmem:[%s167] sm:$0xff]
        %vm174 = vcmp.gt.s32.totalorder %v173, 0
        %v175 = vsel %vm174, %v173, 0
        %vm176 = vcmp.lt.s32.totalorder %v175, 63
        %v177 = vsel %vm176, %v175, 63
        %s178 = smul.u32 %s22, 64
        %v179 = vlaneseq
        %v180 = vand.u32 %v179, 127
        %v181 = vstv %s178
        %v182 = vadd.s32 %v181, %v180
        %183 = vset.pattern.permute.xlu0 0
        %184 = vperm.xlu0 %183, %v177
        %v185 = vpop.permute.xlu0 %184
        %vm186 = vcmp.eq.s32.totalorder %v185, %v182
        %v187 = vsel %vm186, 1, 0
        %v188 = vcvt.s32.f32 %v187
        %v189 = vld [vmem:[#allocation2] sm:$0xff]
        %v190 = vld [vmem:[#allocation3] sm:$0xff]
        %v191 = vld [vmem:[#allocation3 + $0x8] sm:$0xff]
        %v192 = vld [vmem:[#allocation3 + $0x10] sm:$0xff]
        %v193 = vld [vmem:[#allocation3 + $0x18] sm:$0xff]
        %v194 = vld [vmem:[#allocation3 + $0x20] sm:$0xff]
        %v195 = vld [vmem:[#allocation3 + $0x28] sm:$0xff]
        %v196 = vld [vmem:[#allocation3 + $0x30] sm:$0xff]
        %v197 = vld [vmem:[#allocation3 + $0x38] sm:$0xff]
        %vm198 = vcmask 523264
        %v200 = vsel %vm198, %v188, 0
        %202 = vmatpush.msra.mxu0 0.0
        %203 = vmatpush.msra.mxu0 0.0
        %204 = vmatpush.msra.mxu0 0.0
        %205 = vmatpush.msra.mxu0 0.0
        %206 = vmatpush.msra.mxu0 0.0
        %207 = vmatpush.msra.mxu0 0.0
        %208 = vmatpush.msra.mxu0 0.0
        %209 = vmatpush.msra.mxu0 0.0
        %210 = vmatpush.msra.mxu0 %v197
        %211 = vmatpush.msra.mxu0 %v196
        %212 = vmatpush.msra.mxu0 %v195
        %213 = vmatpush.msra.mxu0 %v194
        %214 = vmatpush.msra.mxu0 %v193
        %215 = vmatpush.msra.mxu0 %v192
        %216 = vmatpush.msra.mxu0 %v191
        %217 = vmatpush.msra.mxu0 %v190
        %218 = vmatmul.f32.gmra.mxu0 %v200
        %v219 = vpop.f32.mrf.mxu0
        %v220 = vadd.f32 0.0, %v219
        %221 = vdwg.mxu0
        %v222 = vadd.f32 %v189, %v220
        %223 = vst [vmem:[#allocation2] sm:$0xff] %v222
        // Predicated region
        $region37: #{tpu_custom_call.1} parent=27 // pred_check
          %p224 = pneg %p168
        $region38: #{tpu_custom_call.1} parent=27 // pred_check_branch
          %226 = sbr.rel (%p224) target = $region40
        $region39: #{tpu_custom_call.1} parent=27 // pred_region
          %v227 = vld [vmem:[#allocation2] sm:$0xff]
          %v228 = vmul.f32 %v227, 5.656854
          %229 = vst [vmem:[%s163] sm:$0xff] %v228
        $region40: #{tpu_custom_call.1} parent=27 // pred_fallthru
          _
        %s230 = sand.u32 %s84, 1
        %s231 = scalar_lea.sflag [#allocation5], %s230
        %s232 = sand.u32 %s84, 1
        %s233 = smul.addr %s232, 8
        %s234 = scalar_lea.vmem [#allocation6], %s233
        // Predicated region
        $region41: #{tpu_custom_call.1} parent=27 // pred_check
          %p235 = pneg %p94
        $region42: #{tpu_custom_call.1} parent=27 // pred_check_branch
          %237 = sbr.rel (%p235) target = $region44
        $region43: #{tpu_custom_call.1} parent=27 // pred_region
          %239 = vsyncadd %s231, 0
          %s240 = smul.addr %s21, 8
          %s241 = scalar_lea.hbm %s2, %s240
          %s243 = sshll.u32 %s234, 4
          %s244 = int_to_ptr.vmem [resolvable:$true] %s243
          %s245 = sshll.u32 %s241, 4
          %s246 = int_to_ptr.hbm [resolvable:$true] %s245
          %248 = dma.vmem_to_hbm [thread:$0]  %s244, 128, %s246, %s231
        $region44: #{tpu_custom_call.1} parent=27 // pred_fallthru
          _
      $region28: #{tpu_custom_call.1} parent=5 // pred_fallthru
        _
      %p249 = scmp.le.s32.totalorder 2, %s12
      // Predicated region
      $region45: #{tpu_custom_call.1} parent=5 // pred_check
        %p250 = pneg %p249
      $region46: #{tpu_custom_call.1} parent=5 // pred_check_branch
        %252 = sbr.rel (%p250) target = $region48
      $region47: #{tpu_custom_call.1} parent=5 // pred_region
        %s253 = ssub.s32 %s12, 2
        // Predicated region
        $region49: #{tpu_custom_call.1} parent=47 // pred_check
          %p254 = pneg %p100
        $region50: #{tpu_custom_call.1} parent=47 // pred_check_branch
          %256 = sbr.rel (%p254) target = $region52
        $region51: #{tpu_custom_call.1} parent=47 // pred_region
          %s257 = sand.u32 %s85, 1
          %s258 = scalar_lea.sflag [#allocation5], %s257
          %s259 = sand.u32 %s85, 1
          %s260 = smul.addr %s259, 8
          %s261 = scalar_lea.vmem [#allocation6], %s260
          %263 = dma.done %s258, 128
        $region52: #{tpu_custom_call.1} parent=47 // pred_fallthru
          _
      $region48: #{tpu_custom_call.1} parent=5 // pred_fallthru
        _
    $region6: #{tpu_custom_call.1} parent=1 // loop_footer
      %s16 = sadd.s32 1, %s12
    $region7: #{tpu_custom_call.1} parent=1 // loop_footer_branch
      %11 = sbr.rel target = $region3
    $region8: #{tpu_custom_call.1} parent=1 // loop_exit
      _
    %264 = vsyncpa [#allocation4], 1
    %s265 = scalar_lea.sflag [#allocation4], 1
    %266 = vsyncpa %s265, 1
    %267 = vsyncpa [#allocation5], 1
    %s268 = scalar_lea.sflag [#allocation5], 1
    %269 = vsyncpa %s268, 1

</llo_original>
